<compile_context>
chip_gen: v7x
topology: tpu7x:2x2x1
jax: 0.10.0
libtpu: 0.0.40
codegen_flags: <defaults>
</compile_context>

<pallas_src>
import functools
import math

import jax
import jax.numpy as jnp
from jax.experimental import pallas as pl
from jax.experimental.pallas import tpu as pltpu


def _rmsnorm_kernel(x_ref, w_ref, o_ref, *, eps: float):
    """One (tm, D) row tile; per-row mean over the full last axis."""
    xf = x_ref[...].astype(jnp.float32)                       # x.float()
    ms = jnp.mean(xf * xf, axis=-1, keepdims=True)            # mean(x^2, -1, keepdim)
    inv = jax.lax.rsqrt(ms + eps)                             # rsqrt(ms + eps)
    # Re-materialize the f32 cast for the second use so the f32 copy of the
    # tile is not live across the reduction (smaller VMEM footprint for
    # sub-32-bit inputs).
    normed = (x_ref[...].astype(jnp.float32) * inv).astype(x_ref.dtype)  # .type_as(x)
    o_ref[...] = (normed * w_ref[...]).astype(o_ref.dtype)    # * weight, final cast


def _row_align(dtype) -> int:
    # Sublane packing: 8 rows/vreg for 4-byte dtypes, 16 for 2-byte, 32 for 1-byte.
    return max(8, 32 // max(1, jnp.dtype(dtype).itemsize))


def _vmem_tuning():
    """Generation-aware (tile_budget_bytes, vmem_limit_bytes, max_tm)."""
    cap = 128 * 1024 * 1024
    try:
        info = pltpu.get_tpu_info()
        cap = int(getattr(info, "vmem_capacity_bytes", cap) or cap)
    except Exception:
        pass
    if cap <= 64 * 1024 * 1024:
        # v7x-class: 64 MiB per TensorCore — leave >=20 MiB headroom.
        return 14 * 1024 * 1024, 40 * 1024 * 1024, 2048
    # v5e/v6e-class: 128 MiB VMEM (16/32 MiB scoped defaults).
    return 32 * 1024 * 1024, 96 * 1024 * 1024, 4096


def rmsnorm(
    x: jax.Array,
    weight: jax.Array,
    eps: float,
    *,
    tm: int | None = None,
    out_dtype=None,
) -> jax.Array:
    """RMSNorm over the last axis of x, matching the PyTorch module semantics.

    x:         (..., D)
    weight:    (D,)  (float32 in the reference module)
    out_dtype: output dtype; defaults to torch promotion of
               `normed.type_as(x) * weight`. Pass jnp.bfloat16 for bf16 inputs
               to halve the HBM write traffic when f32 output isn't needed.
    """
    orig_shape = x.shape
    D = orig_shape[-1]
    rows = math.prod(orig_shape[:-1]) if len(orig_shape) > 1 else 1

    x2d = x.reshape(rows, D)
    w2d = weight.reshape(1, D)  # original dtype; promotion happens in-kernel

    if out_dtype is None:
        out_dtype = jnp.promote_types(x.dtype, weight.dtype)  # torch promotion
    out_dtype = jnp.dtype(out_dtype)

    budget, vmem_limit, max_tm = _vmem_tuning()
    align = _row_align(x.dtype)

    if tm is None:
        in_b = jnp.dtype(x.dtype).itemsize
        out_b = out_dtype.itemsize
        # Double-buffered in/out tiles + ~2 single-buffered f32 temporaries.
        bytes_per_row = D * (2 * in_b + 2 * out_b + 8)
        budget_rows = max(1, budget // bytes_per_row)
        if rows <= align:
            tm = rows  # single full-extent block (tiny inputs)
        else:
            tm = min(budget_rows, max_tm, rows)
            if tm >= rows and rows >= 2 * align:
                # Keep >= 2 grid steps so v7x's second TensorCore gets a share
                # of the row axis (harmless on single-TC v5e/v6e).
                tm = pl.cdiv(rows, 2)
            tm = max(align, (min(tm, rows) // align) * align)

    grid = (pl.cdiv(rows, tm),)

    out2d = pl.pallas_call(
        functools.partial(_rmsnorm_kernel, eps=eps),
        out_shape=jax.ShapeDtypeStruct((rows, D), out_dtype),
        grid_spec=pltpu.PrefetchScalarGridSpec(
            num_scalar_prefetch=0,
            grid=grid,
            in_specs=[
                pl.BlockSpec((tm, D), lambda i: (i, 0)),   # input row tile
                pl.BlockSpec((1, D), lambda i: (0, 0)),    # weight, VMEM-resident
            ],
            out_specs=pl.BlockSpec((tm, D), lambda i: (i, 0)),
        ),
        compiler_params=pltpu.CompilerParams(
            dimension_semantics=("parallel",),   # shards rows across v7x's 2 TCs
            vmem_limit_bytes=vmem_limit,         # generation-aware limit
        ),
    )(x2d, w2d)

    return out2d.reshape(orig_shape)


def rmsnorm_ref(x, weight, eps):
    xf = x.astype(jnp.float32)
    normed = xf * jax.lax.rsqrt(jnp.mean(xf * xf, axis=-1, keepdims=True) + eps)
    return normed.astype(x.dtype) * weight  # same promotion as the kernel default


if __name__ == "__main__":
    eps = 1e-6
    k1, k2, k3 = jax.random.split(jax.random.PRNGKey(0), 3)

    # Primary check: shapes consistent with the module (batch=2, seq=8, dim=32).
    B, S, D = 2, 8, 32
    x = jax.random.normal(k1, (B, S, D), dtype=jnp.float32)
    weight = jnp.ones((D,), dtype=jnp.float32)  # nn.Parameter(torch.ones(dim))

    out = jax.block_until_ready(rmsnorm(x, weight, eps))
    ref = rmsnorm_ref(x, weight, eps)
    assert out.shape == x.shape, (out.shape, x.shape)
    assert out.dtype == ref.dtype, (out.dtype, ref.dtype)
    assert jnp.allclose(out, ref, atol=1e-5, rtol=1e-5), "mismatch vs reference"

    # Ragged rows (21 rows, forced tm=8): exercises cdiv grid / masked tail.
    x2 = jax.random.normal(k2, (3, 7, D), dtype=jnp.float32)
    out2 = jax.block_until_ready(rmsnorm(x2, weight, eps, tm=8))
    ref2 = rmsnorm_ref(x2, weight, eps)
    assert out2.shape == x2.shape
    assert jnp.allclose(out2, ref2, atol=1e-5, rtol=1e-5), "ragged-rows mismatch"

    # bf16 input with bf16 output override (lane-dense D=128): 4 B/elem of HBM
    # traffic instead of the 6 B/elem the default f32 promotion would move.
    D3 = 128
    x3 = jax.random.normal(k3, (2, 8, D3), dtype=jnp.bfloat16)
    w3 = jnp.ones((D3,), dtype=jnp.float32)
    out3 = jax.block_until_ready(rmsnorm(x3, w3, eps, out_dtype=jnp.bfloat16))
    ref3 = rmsnorm_ref(x3, w3, eps).astype(jnp.bfloat16)
    assert out3.shape == x3.shape and out3.dtype == jnp.bfloat16
    assert jnp.allclose(out3.astype(jnp.float32), ref3.astype(jnp.float32),
                        atol=2e-2, rtol=2e-2), "bf16-out mismatch"

    print("KERNEL_OK")
</pallas_src>

<mosaic_0001>
module attributes {stable_mosaic.version = 11 : i64} {
  func.func @_rmsnorm_kernel(%arg0: i32, %arg1: memref<8x32xf32, #tpu.memory_space<vmem>>, %arg2: memref<1x32xf32, #tpu.memory_space<vmem>>, %arg3: memref<8x32xf32, #tpu.memory_space<vmem>>) attributes {dimension_semantics = [#tpu.dimension_semantics<parallel>], iteration_bounds = array<i64: 2>, scalar_prefetch = 0 : i64, scratch_operands = 0 : i64, tpu.core_type = #tpu.core_type<tc>, window_params = [{transform_indices = @transform_0, window_bounds = array<i64: 8, 32>}, {pipeline_mode = #tpu.pipeline_mode<synchronous>, transform_indices = @transform_1, window_bounds = array<i64: 1, 32>}, {transform_indices = @transform_2, window_bounds = array<i64: 8, 32>}]} {
    %c0 = arith.constant 0 : index
    %c0_0 = arith.constant 0 : index
    %0 = vector.load %arg1[%c0, %c0_0] : memref<8x32xf32, #tpu.memory_space<vmem>>, vector<8x32xf32>
    %1 = arith.mulf %0, %0 : vector<8x32xf32>
    %cst = arith.constant dense<0.000000e+00> : vector<8xf32>
    %2 = vector.multi_reduction <add>, %1, %cst [1] : vector<8x32xf32> to vector<8xf32>
    %3 = vector.shape_cast %2 : vector<8xf32> to vector<8x1xf32>
    %cst_1 = arith.constant 3.200000e+01 : f32
    %4 = vector.broadcast %cst_1 : f32 to vector<8x1xf32>
    %5 = arith.divf %3, %4 : vector<8x1xf32>
    %cst_2 = arith.constant 9.99999997E-7 : f32
    %6 = vector.broadcast %cst_2 : f32 to vector<8x1xf32>
    %7 = arith.addf %5, %6 : vector<8x1xf32>
    %8 = math.rsqrt %7 : vector<8x1xf32>
    %c0_3 = arith.constant 0 : index
    %c0_4 = arith.constant 0 : index
    %9 = vector.load %arg1[%c0_3, %c0_4] : memref<8x32xf32, #tpu.memory_space<vmem>>, vector<8x32xf32>
    %10 = vector.broadcast %8 : vector<8x1xf32> to vector<8x32xf32>
    %11 = arith.mulf %9, %10 : vector<8x32xf32>
    %c0_5 = arith.constant 0 : index
    %c0_6 = arith.constant 0 : index
    %12 = vector.load %arg2[%c0_5, %c0_6] : memref<1x32xf32, #tpu.memory_space<vmem>>, vector<1x32xf32>
    %13 = vector.broadcast %12 : vector<1x32xf32> to vector<8x32xf32>
    %14 = arith.mulf %11, %13 : vector<8x32xf32>
    %c0_7 = arith.constant 0 : index
    %c0_8 = arith.constant 0 : index
    %15 = vector.load %arg3[%c0_7, %c0_8] : memref<8x32xf32, #tpu.memory_space<vmem>>, vector<8x32xf32>
    tpu.vector_store %arg3[%c0_7, %c0_8], %14 {strides = array<i32>} : memref<8x32xf32, #tpu.memory_space<vmem>>, vector<8x32xf32>,
    return
  }
  func.func @transform_0(%arg0: i32) -> (i32, i32) {
    %c0_i32 = arith.constant 0 : i32
    %c0_i32_0 = arith.constant 0 : i32
    return %arg0, %c0_i32 : i32, i32
  }
  func.func @transform_1(%arg0: i32) -> (i32, i32) {
    %c0_i32 = arith.constant 0 : i32
    %c0_i32_0 = arith.constant 0 : i32
    %c0_i32_1 = arith.constant 0 : i32
    return %c0_i32, %c0_i32_0 : i32, i32
  }
  func.func @transform_2(%arg0: i32) -> (i32, i32) {
    %c0_i32 = arith.constant 0 : i32
    %c0_i32_0 = arith.constant 0 : i32
    return %arg0, %c0_i32 : i32, i32
  }
}

</mosaic_0001>

<llo_original>
// kernel: tpu_custom_call.1
$region0: #{tpu_custom_call.1}
  #allocation0 [shape = 'u32[]', space=smem, size = 0x4, offset = 0x4, fixed_abs, tag = 'smem constant byte address 0x4 - core index']
  #allocation1 [shape = 'u32[144,128]{1,0:T(1,128)}', space=vmem, size = 0x12000, scoped, tag = 'internal scratch']
  %s0 = inlined_call_operand.hbm [shape: f32[16,32], index: 0, kind: input, shape index: {}]
  %s1 = inlined_call_operand.hbm [shape: f32[1,32], index: 1, kind: input, shape index: {}]
  %s2 = inlined_call_operand.hbm [shape: f32[16,32], index: 2, kind: output, shape index: {}]
  %s3 = sld [smem:[#allocation0]]
  $region49: #{tpu_custom_call.1} parent=0
    _
  %s5 = ssub.s32 1, %s3
  %s6 = scalar_select 0, %s5, %s3
  $region1: #{tpu_custom_call.1} parent=0
    #allocation2 [shape = 'u8[8192]{0}', space=vmem, size = 0x2000, scoped, tag = 'input window, operand 0']
    #allocation3 [shape = 's32[2]{0}', space=sflag, size = 0x8, scoped, tag = 'scoped memory for tpu_custom_call.1']
    #allocation4 [shape = 's32[2]{0}', space=sflag, size = 0x8, scoped, tag = 'scoped memory for tpu_custom_call.1']
    #allocation5 [shape = 'u8[512]{0}', space=vmem, size = 0x400, scoped, tag = 'input window, operand 1, single buffered']
    #allocation6 [shape = 's32[1]{0}', space=sflag, size = 0x4, scoped, tag = 'scoped memory for tpu_custom_call.1']
    #allocation7 [shape = 'u8[8192]{0}', space=vmem, size = 0x2000, scoped, tag = 'output window, operand 0']
    %7 = vsyncpa [#allocation3], 0
    %s8 = scalar_lea.sflag [#allocation3], 1
    %9 = vsyncpa %s8, 0
    %10 = vsyncpa [#allocation6], 0
    %11 = vsyncpa [#allocation4], 0
    %s12 = scalar_lea.sflag [#allocation4], 1
    %13 = vsyncpa %s12, 0
    loop: start=0, step=1, limit=4
    $region2: #{tpu_custom_call.1} parent=1 // loop_pre_header
      _
    $region3: #{tpu_custom_call.1} parent=1 // loop_header
      %s15 = sphi 0, %s19
      %p16 = scmp.ge.s32.totalorder %s15, 4
      %s25 = sphi 0, %s27
      %s28 = sphi 0, %s25
      %s29 = sphi 0, %s28
      %s45 = sphi 0, %s29
      %s49 = sphi 0, %s49
      %s51 = sphi 0, %s49
      %s52 = sphi 0, %s51
      %s66 = sphi 0, %s52
      %s72 = sphi 0, %s74
      %s75 = sphi 0, %s72
      %s76 = sphi 0, %s75
      %s92 = sphi 0, %s76
    $region4: #{tpu_custom_call.1} parent=1 // loop_header_branch
      %18 = sbr.rel (%p16) target = $region8
    $region5: #{tpu_custom_call.1} parent=1 // loop_body
      %s20 = ssub.s32 %s15, 1
      %s21 = ssub.s32 %s15, 2
      %s22 = sadd.s32 %s15, 1
      %s23 = ssub.s32 %s15, %s22
      %p24 = scmp.eq.s32.totalorder %s23, 0
      %s26 = sadd.s32 %s25, 1
      %s27 = scalar_select %p24, %s25, %s26
      %p30 = pneg %p24
      %p31 = scmp.eq.s32.totalorder %s15, 1
      %p32 = por %p30, %p31
      %p33 = scmp.ne.s32.totalorder %s25, %s28
      %p34 = scmp.eq.s32.totalorder %s15, 0
      %p35 = por %p33, %p34
      %p36 = scmp.ne.s32.totalorder %s25, %s28
      %p37 = scmp.eq.s32.totalorder %s20, 1
      %p38 = por %p36, %p37
      %p39 = scmp.ne.s32.totalorder %s28, %s29
      %p40 = scmp.eq.s32.totalorder %s20, 0
      %p41 = por %p39, %p40
      %p42 = scmp.ne.s32.totalorder %s28, %s29
      %p43 = scmp.eq.s32.totalorder %s21, 1
      %p44 = por %p42, %p43
      %p46 = scmp.ne.s32.totalorder %s29, %s45
      %p47 = scmp.eq.s32.totalorder %s21, 0
      %p48 = por %p46, %p47
      %s50 = sadd.s32 %s49, 1
      %p53 = scmp.eq.s32.totalorder %s15, 1
      %p54 = scmp.ne.s32.totalorder %s49, %s51
      %p55 = scmp.eq.s32.totalorder %s15, 0
      %p56 = por %p54, %p55
      %p57 = scmp.ne.s32.totalorder %s49, %s51
      %p58 = scmp.eq.s32.totalorder %s20, 1
      %p59 = por %p57, %p58
      %p60 = scmp.ne.s32.totalorder %s51, %s52
      %p61 = scmp.eq.s32.totalorder %s20, 0
      %p62 = por %p60, %p61
      %p63 = scmp.ne.s32.totalorder %s51, %s52
      %p64 = scmp.eq.s32.totalorder %s21, 1
      %p65 = por %p63, %p64
      %p67 = scmp.ne.s32.totalorder %s52, %s66
      %p68 = scmp.eq.s32.totalorder %s21, 0
      %p69 = por %p67, %p68
      %s70 = ssub.s32 %s15, %s22
      %p71 = scmp.eq.s32.totalorder %s70, 0
      %s73 = sadd.s32 %s72, 1
      %s74 = scalar_select %p71, %s72, %s73
      %p77 = pneg %p71
      %p78 = scmp.eq.s32.totalorder %s15, 1
      %p79 = por %p77, %p78
      %p80 = scmp.ne.s32.totalorder %s72, %s75
      %p81 = scmp.eq.s32.totalorder %s15, 0
      %p82 = por %p80, %p81
      %p83 = scmp.ne.s32.totalorder %s72, %s75
      %p84 = scmp.eq.s32.totalorder %s20, 1
      %p85 = por %p83, %p84
      %p86 = scmp.ne.s32.totalorder %s75, %s76
      %p87 = scmp.eq.s32.totalorder %s20, 0
      %p88 = por %p86, %p87
      %p89 = scmp.ne.s32.totalorder %s75, %s76
      %p90 = scmp.eq.s32.totalorder %s21, 1
      %p91 = por %p89, %p90
      %p93 = scmp.ne.s32.totalorder %s76, %s92
      %p94 = scmp.eq.s32.totalorder %s21, 0
      %p95 = por %p93, %p94
      %p96 = scmp.le.s32.totalorder 1, %s15
      %p97 = scmp.lt.s32.totalorder %s15, 3
      %p98 = pnand %p96, %p97
      %p99 = pneg %p98
      // Predicated region
      $region9: #{tpu_custom_call.1} parent=5 // pred_check
        _
      $region10: #{tpu_custom_call.1} parent=5 // pred_check_branch
        %101 = sbr.rel (%p98) target = $region12
      $region11: #{tpu_custom_call.1} parent=5 // pred_region
        %s102 = ssub.s32 %s15, 1
        // Predicated region
        $region13: #{tpu_custom_call.1} parent=11 // pred_check
          %p103 = pneg %p62
        $region14: #{tpu_custom_call.1} parent=11 // pred_check_branch
          %105 = sbr.rel (%p103) target = $region16
        $region15: #{tpu_custom_call.1} parent=11 // pred_region
          %s107 = ssub.s32 16, 16
          %108 = vsyncadd [#allocation6], %s107
          %s110 = sshll.u32 [#allocation5], 4
          %s111 = int_to_ptr.vmem [resolvable:$true] %s110
          %113 = dma.hbm_to_vmem [thread:$0]  %s1, 16, %s111, [#allocation6]
        $region16: #{tpu_custom_call.1} parent=11 // pred_fallthru
          _
      $region12: #{tpu_custom_call.1} parent=5 // pred_fallthru
        _
      %p114 = scmp.lt.s32.totalorder %s15, 2
      // Predicated region
      $region17: #{tpu_custom_call.1} parent=5 // pred_check
        %p115 = pneg %p114
      $region18: #{tpu_custom_call.1} parent=5 // pred_check_branch
        %117 = sbr.rel (%p115) target = $region20
      $region19: #{tpu_custom_call.1} parent=5 // pred_region
        // Predicated region
        $region21: #{tpu_custom_call.1} parent=19 // pred_check
          %p118 = pneg %p35
        $region22: #{tpu_custom_call.1} parent=19 // pred_check_branch
          %120 = sbr.rel (%p118) target = $region24
        $region23: #{tpu_custom_call.1} parent=19 // pred_region
          %s121 = sand.u32 %s25, 1
          %s122 = scalar_lea.sflag [#allocation3], %s121
          %s123 = sand.u32 %s25, 1
          %s124 = smul.addr %s123, 8
          %s125 = scalar_lea.vmem [#allocation2], %s124
          %s127 = ssub.s32 128, 128
          %128 = vsyncadd %s122, %s127
          %s129 = smul.addr %s15, 128
          %s130 = scalar_lea.hbm %s0, %s129
          %s132 = sshll.u32 %s125, 4
          %s133 = int_to_ptr.vmem [resolvable:$true] %s132
          %135 = dma.hbm_to_vmem [thread:$0]  %s130, 128, %s133, %s122
        $region24: #{tpu_custom_call.1} parent=19 // pred_fallthru
          _
      $region20: #{tpu_custom_call.1} parent=5 // pred_fallthru
        _
      %p136 = scmp.le.s32.totalorder 1, %s15
      %p137 = scmp.lt.s32.totalorder %s15, 3
      %p138 = pnand %p136, %p137
      %p139 = pneg %p138
      // Predicated region
      $region25: #{tpu_custom_call.1} parent=5 // pred_check
        _
      $region26: #{tpu_custom_call.1} parent=5 // pred_check_branch
        %141 = sbr.rel (%p138) target = $region28
      $region27: #{tpu_custom_call.1} parent=5 // pred_region
        %s142 = ssub.s32 %s15, 1
        %s143 = sand.u32 %s28, 1
        %s144 = scalar_lea.sflag [#allocation3], %s143
        %s145 = sand.u32 %s28, 1
        %s146 = smul.addr %s145, 8
        %s147 = scalar_lea.vmem [#allocation2], %s146
        // Predicated region
        $region29: #{tpu_custom_call.1} parent=27 // pred_check
          %p148 = pneg %p41
        $region30: #{tpu_custom_call.1} parent=27 // pred_check_branch
          %150 = sbr.rel (%p148) target = $region32
        $region31: #{tpu_custom_call.1} parent=27 // pred_region
          %151 = dma.done %s144, 128
        $region32: #{tpu_custom_call.1} parent=27 // pred_fallthru
          _
        // Predicated region
        $region33: #{tpu_custom_call.1} parent=27 // pred_check
          %p152 = pneg %p62
        $region34: #{tpu_custom_call.1} parent=27 // pred_check_branch
          %154 = sbr.rel (%p152) target = $region36
        $region35: #{tpu_custom_call.1} parent=27 // pred_region
          %155 = dma.done [#allocation6], 16
        $region36: #{tpu_custom_call.1} parent=27 // pred_fallthru
          _
        %s156 = sand.u32 %s28, 1
        %s157 = scalar_lea.sflag [#allocation3], %s156
        %s158 = sand.u32 %s28, 1
        %s159 = smul.addr %s158, 8
        %s160 = scalar_lea.vmem [#allocation2], %s159
        %p161 = pneg %p41
        %p162 = pneg %p38
        %p163 = pneg %p62
        %p164 = pneg %p59
        %p165 = pneg %p88
        %p166 = pneg %p85
        %s167 = sand.u32 %s75, 1
        %s168 = scalar_lea.sflag [#allocation4], %s167
        %s169 = sand.u32 %s75, 1
        %s170 = smul.addr %s169, 8
        %s171 = scalar_lea.vmem [#allocation7], %s170
        %v172 = vld [vmem:[%s147] sm:$0xff]
        %v173 = vmul.f32 %v172, %v172
        %vm174 = vcmask 261120
        %v175 = vsel %vm174, %v173, 0.0
        %176 = vadd.xlane.f32.xlu0 %v175
        %v177 = vpop.xlane.xlu0 %176
        %v178 = vrcp.pop 32.0
        %v179 = vmul.f32 %v177, %v178
        %v180 = vadd.f32 %v179, 1e-06
        %v181 = vrsqrt.pop %v180
        %v182 = vmul.f32 %v172, %v181
        %v183 = vld [vmem:[#allocation5] sm:$0x1]
        %v185 = vlaneseq
        %v186 = vshrl.u32 %v185, 7
        %v187 = vsub.s32 0, %v186
        %v188 = vrot.slane %v183, %v187
        %v190 = vmul.f32 %v182, %v188
        %191 = vst.msk [vmem:[%s171] sm:$0xff] %vm174, %v190
        %s192 = sand.u32 %s75, 1
        %s193 = scalar_lea.sflag [#allocation4], %s192
        %s194 = sand.u32 %s75, 1
        %s195 = smul.addr %s194, 8
        %s196 = scalar_lea.vmem [#allocation7], %s195
        // Predicated region
        $region37: #{tpu_custom_call.1} parent=27 // pred_check
          %p197 = pneg %p85
        $region38: #{tpu_custom_call.1} parent=27 // pred_check_branch
          %199 = sbr.rel (%p197) target = $region40
        $region39: #{tpu_custom_call.1} parent=27 // pred_region
          %s201 = ssub.s32 128, 128
          %202 = vsyncadd %s193, %s201
          %s203 = smul.addr %s20, 128
          %s204 = scalar_lea.hbm %s2, %s203
          %s206 = sshll.u32 %s196, 4
          %s207 = int_to_ptr.vmem [resolvable:$true] %s206
          %209 = dma.vmem_to_hbm [thread:$0]  %s207, 128, %s204, %s193
        $region40: #{tpu_custom_call.1} parent=27 // pred_fallthru
          _
      $region28: #{tpu_custom_call.1} parent=5 // pred_fallthru
        _
      %p210 = scmp.le.s32.totalorder 2, %s15
      // Predicated region
      $region41: #{tpu_custom_call.1} parent=5 // pred_check
        %p211 = pneg %p210
      $region42: #{tpu_custom_call.1} parent=5 // pred_check_branch
        %213 = sbr.rel (%p211) target = $region44
      $region43: #{tpu_custom_call.1} parent=5 // pred_region
        %s214 = ssub.s32 %s15, 2
        // Predicated region
        $region45: #{tpu_custom_call.1} parent=43 // pred_check
          %p215 = pneg %p91
        $region46: #{tpu_custom_call.1} parent=43 // pred_check_branch
          %217 = sbr.rel (%p215) target = $region48
        $region47: #{tpu_custom_call.1} parent=43 // pred_region
          %s218 = sand.u32 %s76, 1
          %s219 = scalar_lea.sflag [#allocation4], %s218
          %s220 = sand.u32 %s76, 1
          %s221 = smul.addr %s220, 8
          %s222 = scalar_lea.vmem [#allocation7], %s221
          %223 = dma.done %s219, 128
        $region48: #{tpu_custom_call.1} parent=43 // pred_fallthru
          _
      $region44: #{tpu_custom_call.1} parent=5 // pred_fallthru
        _
    $region6: #{tpu_custom_call.1} parent=1 // loop_footer
      %s19 = sadd.s32 1, %s15
    $region7: #{tpu_custom_call.1} parent=1 // loop_footer_branch
      %14 = sbr.rel target = $region3
    $region8: #{tpu_custom_call.1} parent=1 // loop_exit
      _
    %224 = vsyncpa [#allocation3], 1
    %s225 = scalar_lea.sflag [#allocation3], 1
    %226 = vsyncpa %s225, 1
    %227 = vsyncpa [#allocation6], 1
    %228 = vsyncpa [#allocation4], 1
    %s229 = scalar_lea.sflag [#allocation4], 1
    %230 = vsyncpa %s229, 1

</llo_original>
